<compile_context>
chip_gen: v5e
topology: v5e:2x2
jax: 0.10.0
libtpu: 0.0.40
codegen_flags: <defaults>
</compile_context>

<pallas_src>
import jax
import jax.numpy as jnp
from jax.experimental import pallas as pl
from jax.experimental.pallas import tpu as pltpu

# ---- small, module-consistent shapes -------------------------------------
C_Z = 4                    # latent channels of z
C_CC = 4                   # c_concat channels
C_IN = C_Z + C_CC
C_OUT = 4                  # inner model output channels (same as latent)
H = W = 16
SEQ = 8                    # c_crossattn sequence length
CTX = 32                   # c_crossattn hidden size
HW = H * W                 # 256 -> lane-dense (2 x 128 lanes)
C_PACK = C_Z + 2 * C_CC    # 12 packed input rows: [z | cond c_concat | uncond c_concat]

_HI = jax.lax.Precision.HIGHEST


# ---------------------------------------------------------------------------
# Pallas kernel: fused synthetic inner_model + pre-folded CFG combine.
# Channel-major everywhere; full-block VPU ops, single full-block store.
# ---------------------------------------------------------------------------
def _cfg_denoiser_kernel(p_ref, x_ref, o_ref):
    # p_ref : VMEM f32[C_OUT, 1 + C_PACK]
    #         col 0      = folded cross-attn bias  t*bias_cond + (1-t)*bias_unc
    #         cols 1..4  = c_out         * W1[z channels].T
    #         cols 5..8  = c_out*s       * W1[c_concat channels].T   (cond)
    #         cols 9..12 = c_out*(1-s)   * W1[c_concat channels].T   (uncond)
    # x_ref : VMEM f32[C_PACK, HW]  rows = [z(4) | cond c_concat(4) | uncond c_concat(4)]
    # o_ref : VMEM f32[C_OUT, HW]   CFG-combined output, channel-major (lane-dense)
    p = p_ref[...]                                        # (C_OUT, 1 + C_PACK)
    x = x_ref[...]                                        # (C_PACK, HW)

    # accumulator = folded bias, broadcast to the full (C_OUT, HW) block
    acc = jnp.broadcast_to(p[:, 0:1], (C_OUT, HW))

    # 1x1-conv contraction + CFG combine as 12 full-block FMAs of shape (4, HW):
    #   acc[d, :] += p[d, c+1] * x[c, :]   via (C_OUT,1) x (1,HW) broadcasting
    for c in range(C_PACK):
        acc = acc + p[:, c + 1:c + 2] * x[c:c + 1, :]

    o_ref[...] = acc                                      # single unmasked block store


# ---------------------------------------------------------------------------
# Wrapper: mirrors CFGDenoiser.forward.  The conditioning repeat / concat /
# chunk(3) / CFG combine are folded algebraically into per-column weight
# scales (see header); the hot per-pixel path runs in one Pallas kernel.
# ---------------------------------------------------------------------------
def cfg_denoiser(z, sigma, cond, uncond, text_cfg_scale, image_cfg_scale, w1, w2):
    t = jnp.float32(text_cfg_scale)
    s = jnp.float32(image_cfg_scale)

    # context-bias path hoisted out of the kernel (tiny: (32,) @ (32,4) twice)
    ctx_cond = jnp.mean(cond['c_crossattn'][0][0], axis=0)        # (CTX,)
    ctx_unc = jnp.mean(uncond['c_crossattn'][0][0], axis=0)       # (CTX,)
    bias_cond = jnp.dot(ctx_cond, w2, precision=_HI)              # (C_OUT,)
    bias_unc = jnp.dot(ctx_unc, w2, precision=_HI)                # (C_OUT,)
    # branch biases are (cond, uncond, uncond) -> CFG-fold to t*bc + (1-t)*bu
    bias_final = t * bias_cond + (1.0 - t) * bias_unc             # (C_OUT,)

    # sigma is broadcast to all 3 branches, so one c_out scale suffices.
    # TODO(synk): real k-diffusion denoiser uses full (c_in, c_skip, c_out)
    # preconditioning and a UNet; here only the c_out term feeds the stand-in.
    c_out = 1.0 / jnp.sqrt(sigma.astype(jnp.float32)[0] ** 2 + 1.0)

    # Fold CFG coefficients into the transposed 1x1-conv weight columns and
    # pack bias + weights into one small (C_OUT, 1 + C_PACK) params tile.
    w1t = w1.astype(jnp.float32).T                                # (C_OUT, C_IN)
    params = jnp.concatenate(
        [bias_final[:, None],
         c_out * w1t[:, :C_Z],
         (c_out * s) * w1t[:, C_Z:],
         (c_out * (1.0 - s)) * w1t[:, C_Z:]],
        axis=1,
    ).astype(jnp.float32)                                         # (C_OUT, 13)

    # Pack z / cond c_concat / uncond c_concat into one channel-major,
    # lane-dense (C_PACK, HW) VMEM input (single DMA descriptor).
    x_packed = jnp.concatenate(
        [z[0].reshape(C_Z, HW),
         cond['c_concat'][0][0].reshape(C_CC, HW),
         uncond['c_concat'][0][0].reshape(C_CC, HW)],
        axis=0,
    ).astype(jnp.float32)                                         # (C_PACK, HW)

    out_flat = pl.pallas_call(
        _cfg_denoiser_kernel,
        out_shape=jax.ShapeDtypeStruct((C_OUT, HW), jnp.float32),
        in_specs=[
            pl.BlockSpec(memory_space=pltpu.MemorySpace.VMEM),    # params (4, 13)
            pl.BlockSpec(memory_space=pltpu.MemorySpace.VMEM),    # packed inputs (12, 256)
        ],
        out_specs=pl.BlockSpec(memory_space=pltpu.MemorySpace.VMEM),
    )(params, x_packed)

    # (C_OUT, HW) channel-major is already NCHW — just add the batch dim.
    return out_flat.reshape(1, C_OUT, H, W)


# ---------------------------------------------------------------------------
# Pure-JAX reference (mirrors the PyTorch forward incl. repeat/concat/chunk(3)
# and the literal CFG combine) for checking the folded kernel.
# ---------------------------------------------------------------------------
def _inner_model_ref(cfg_z, cfg_sigma, cc_concat, cc_cross, w1, w2):
    n = cfg_z.shape[0]
    zc = jnp.concatenate([cfg_z, cc_concat], axis=1)              # (n, C_IN, H, W)
    x = jnp.transpose(zc, (0, 2, 3, 1)).reshape(n, HW, C_IN)
    h = jnp.einsum('nrc,cd->nrd', x, w1, precision=_HI)
    bias = jnp.dot(jnp.mean(cc_cross, axis=1), w2, precision=_HI)
    c_out = 1.0 / jnp.sqrt(cfg_sigma ** 2 + 1.0)
    out = h * c_out[:, None, None] + bias[:, None, :]
    return jnp.transpose(out.reshape(n, H, W, C_OUT), (0, 3, 1, 2))


def cfg_denoiser_ref(z, sigma, cond, uncond, text_cfg_scale, image_cfg_scale, w1, w2):
    cfg_z = jnp.broadcast_to(z, (3,) + z.shape[1:])
    cfg_sigma = jnp.broadcast_to(sigma, (3,) + sigma.shape[1:])
    cc_cross = jnp.concatenate([cond['c_crossattn'][0],
                                uncond['c_crossattn'][0],
                                uncond['c_crossattn'][0]], axis=0)
    cc_concat = jnp.concatenate([cond['c_concat'][0],
                                 cond['c_concat'][0],
                                 uncond['c_concat'][0]], axis=0)
    out = _inner_model_ref(cfg_z, cfg_sigma, cc_concat, cc_cross, w1, w2)
    out_cond, out_img_cond, out_uncond = out[0:1], out[1:2], out[2:3]
    return (out_uncond
            + text_cfg_scale * (out_cond - out_img_cond)
            + image_cfg_scale * (out_img_cond - out_uncond))


if __name__ == "__main__":
    key = jax.random.PRNGKey(0)
    k1, k2, k3, k4, k5, k6, k7, k8 = jax.random.split(key, 8)

    z = jax.random.normal(k1, (1, C_Z, H, W), jnp.float32)
    sigma = jnp.abs(jax.random.normal(k2, (1,), jnp.float32)) + 0.5
    cond = {
        'c_crossattn': [jax.random.normal(k3, (1, SEQ, CTX), jnp.float32)],
        'c_concat':    [jax.random.normal(k4, (1, C_CC, H, W), jnp.float32)],
    }
    # NOTE: uncond c_concat is nonzero so the (1 - image_cfg_scale) branch is
    # actually exercised by the correctness check.
    uncond = {
        'c_crossattn': [jax.random.normal(k5, (1, SEQ, CTX), jnp.float32)],
        'c_concat':    [jax.random.normal(k8, (1, C_CC, H, W), jnp.float32)],
    }
    # deterministic synthetic inner-model weights
    w1 = jax.random.normal(k6, (C_IN, C_OUT), jnp.float32) / jnp.sqrt(float(C_IN))
    w2 = jax.random.normal(k7, (CTX, C_OUT), jnp.float32) / jnp.sqrt(float(CTX))

    text_cfg_scale = 7.5
    image_cfg_scale = 1.5

    out = cfg_denoiser(z, sigma, cond, uncond, text_cfg_scale, image_cfg_scale, w1, w2)
    out = jax.block_until_ready(out)

    ref = cfg_denoiser_ref(z, sigma, cond, uncond, text_cfg_scale, image_cfg_scale, w1, w2)
    assert out.shape == (1, C_OUT, H, W), out.shape
    assert bool(jnp.allclose(out, ref, atol=2e-4, rtol=2e-4)), "mismatch vs reference"

    print("KERNEL_OK")
</pallas_src>

<mosaic_0001>
module attributes {stable_mosaic.version = 11 : i64} {
  func.func @_cfg_denoiser_kernel(%arg0: memref<4x13xf32, #tpu.memory_space<vmem>>, %arg1: memref<12x256xf32, #tpu.memory_space<vmem>>, %arg2: memref<4x256xf32, #tpu.memory_space<vmem>>) attributes {dimension_semantics = [], scalar_prefetch = 0 : i64, scratch_operands = 0 : i64, tpu.core_type = #tpu.core_type<tc>} {
    %c0 = arith.constant 0 : index
    %c0_0 = arith.constant 0 : index
    %0 = vector.load %arg0[%c0, %c0_0] : memref<4x13xf32, #tpu.memory_space<vmem>>, vector<4x13xf32>
    %c0_1 = arith.constant 0 : index
    %c0_2 = arith.constant 0 : index
    %1 = vector.load %arg1[%c0_1, %c0_2] : memref<12x256xf32, #tpu.memory_space<vmem>>, vector<12x256xf32>
    %2 = vector.extract_strided_slice %0 {offsets = [0, 0], sizes = [4, 1], strides = [1, 1]} : vector<4x13xf32> to vector<4x1xf32>
    %3 = vector.shape_cast %2 : vector<4x1xf32> to vector<4x1xf32>
    %4 = vector.broadcast %3 : vector<4x1xf32> to vector<4x256xf32>
    %5 = vector.extract_strided_slice %0 {offsets = [0, 1], sizes = [4, 1], strides = [1, 1]} : vector<4x13xf32> to vector<4x1xf32>
    %6 = vector.extract_strided_slice %1 {offsets = [0, 0], sizes = [1, 256], strides = [1, 1]} : vector<12x256xf32> to vector<1x256xf32>
    %7 = vector.broadcast %5 : vector<4x1xf32> to vector<4x256xf32>
    %8 = vector.broadcast %6 : vector<1x256xf32> to vector<4x256xf32>
    %9 = arith.mulf %7, %8 : vector<4x256xf32>
    %10 = arith.addf %4, %9 : vector<4x256xf32>
    %11 = vector.extract_strided_slice %0 {offsets = [0, 2], sizes = [4, 1], strides = [1, 1]} : vector<4x13xf32> to vector<4x1xf32>
    %12 = vector.extract_strided_slice %1 {offsets = [1, 0], sizes = [1, 256], strides = [1, 1]} : vector<12x256xf32> to vector<1x256xf32>
    %13 = vector.broadcast %11 : vector<4x1xf32> to vector<4x256xf32>
    %14 = vector.broadcast %12 : vector<1x256xf32> to vector<4x256xf32>
    %15 = arith.mulf %13, %14 : vector<4x256xf32>
    %16 = arith.addf %10, %15 : vector<4x256xf32>
    %17 = vector.extract_strided_slice %0 {offsets = [0, 3], sizes = [4, 1], strides = [1, 1]} : vector<4x13xf32> to vector<4x1xf32>
    %18 = vector.extract_strided_slice %1 {offsets = [2, 0], sizes = [1, 256], strides = [1, 1]} : vector<12x256xf32> to vector<1x256xf32>
    %19 = vector.broadcast %17 : vector<4x1xf32> to vector<4x256xf32>
    %20 = vector.broadcast %18 : vector<1x256xf32> to vector<4x256xf32>
    %21 = arith.mulf %19, %20 : vector<4x256xf32>
    %22 = arith.addf %16, %21 : vector<4x256xf32>
    %23 = vector.extract_strided_slice %0 {offsets = [0, 4], sizes = [4, 1], strides = [1, 1]} : vector<4x13xf32> to vector<4x1xf32>
    %24 = vector.extract_strided_slice %1 {offsets = [3, 0], sizes = [1, 256], strides = [1, 1]} : vector<12x256xf32> to vector<1x256xf32>
    %25 = vector.broadcast %23 : vector<4x1xf32> to vector<4x256xf32>
    %26 = vector.broadcast %24 : vector<1x256xf32> to vector<4x256xf32>
    %27 = arith.mulf %25, %26 : vector<4x256xf32>
    %28 = arith.addf %22, %27 : vector<4x256xf32>
    %29 = vector.extract_strided_slice %0 {offsets = [0, 5], sizes = [4, 1], strides = [1, 1]} : vector<4x13xf32> to vector<4x1xf32>
    %30 = vector.extract_strided_slice %1 {offsets = [4, 0], sizes = [1, 256], strides = [1, 1]} : vector<12x256xf32> to vector<1x256xf32>
    %31 = vector.broadcast %29 : vector<4x1xf32> to vector<4x256xf32>
    %32 = vector.broadcast %30 : vector<1x256xf32> to vector<4x256xf32>
    %33 = arith.mulf %31, %32 : vector<4x256xf32>
    %34 = arith.addf %28, %33 : vector<4x256xf32>
    %35 = vector.extract_strided_slice %0 {offsets = [0, 6], sizes = [4, 1], strides = [1, 1]} : vector<4x13xf32> to vector<4x1xf32>
    %36 = vector.extract_strided_slice %1 {offsets = [5, 0], sizes = [1, 256], strides = [1, 1]} : vector<12x256xf32> to vector<1x256xf32>
    %37 = vector.broadcast %35 : vector<4x1xf32> to vector<4x256xf32>
    %38 = vector.broadcast %36 : vector<1x256xf32> to vector<4x256xf32>
    %39 = arith.mulf %37, %38 : vector<4x256xf32>
    %40 = arith.addf %34, %39 : vector<4x256xf32>
    %41 = vector.extract_strided_slice %0 {offsets = [0, 7], sizes = [4, 1], strides = [1, 1]} : vector<4x13xf32> to vector<4x1xf32>
    %42 = vector.extract_strided_slice %1 {offsets = [6, 0], sizes = [1, 256], strides = [1, 1]} : vector<12x256xf32> to vector<1x256xf32>
    %43 = vector.broadcast %41 : vector<4x1xf32> to vector<4x256xf32>
    %44 = vector.broadcast %42 : vector<1x256xf32> to vector<4x256xf32>
    %45 = arith.mulf %43, %44 : vector<4x256xf32>
    %46 = arith.addf %40, %45 : vector<4x256xf32>
    %47 = vector.extract_strided_slice %0 {offsets = [0, 8], sizes = [4, 1], strides = [1, 1]} : vector<4x13xf32> to vector<4x1xf32>
    %48 = vector.extract_strided_slice %1 {offsets = [7, 0], sizes = [1, 256], strides = [1, 1]} : vector<12x256xf32> to vector<1x256xf32>
    %49 = vector.broadcast %47 : vector<4x1xf32> to vector<4x256xf32>
    %50 = vector.broadcast %48 : vector<1x256xf32> to vector<4x256xf32>
    %51 = arith.mulf %49, %50 : vector<4x256xf32>
    %52 = arith.addf %46, %51 : vector<4x256xf32>
    %53 = vector.extract_strided_slice %0 {offsets = [0, 9], sizes = [4, 1], strides = [1, 1]} : vector<4x13xf32> to vector<4x1xf32>
    %54 = vector.extract_strided_slice %1 {offsets = [8, 0], sizes = [1, 256], strides = [1, 1]} : vector<12x256xf32> to vector<1x256xf32>
    %55 = vector.broadcast %53 : vector<4x1xf32> to vector<4x256xf32>
    %56 = vector.broadcast %54 : vector<1x256xf32> to vector<4x256xf32>
    %57 = arith.mulf %55, %56 : vector<4x256xf32>
    %58 = arith.addf %52, %57 : vector<4x256xf32>
    %59 = vector.extract_strided_slice %0 {offsets = [0, 10], sizes = [4, 1], strides = [1, 1]} : vector<4x13xf32> to vector<4x1xf32>
    %60 = vector.extract_strided_slice %1 {offsets = [9, 0], sizes = [1, 256], strides = [1, 1]} : vector<12x256xf32> to vector<1x256xf32>
    %61 = vector.broadcast %59 : vector<4x1xf32> to vector<4x256xf32>
    %62 = vector.broadcast %60 : vector<1x256xf32> to vector<4x256xf32>
    %63 = arith.mulf %61, %62 : vector<4x256xf32>
    %64 = arith.addf %58, %63 : vector<4x256xf32>
    %65 = vector.extract_strided_slice %0 {offsets = [0, 11], sizes = [4, 1], strides = [1, 1]} : vector<4x13xf32> to vector<4x1xf32>
    %66 = vector.extract_strided_slice %1 {offsets = [10, 0], sizes = [1, 256], strides = [1, 1]} : vector<12x256xf32> to vector<1x256xf32>
    %67 = vector.broadcast %65 : vector<4x1xf32> to vector<4x256xf32>
    %68 = vector.broadcast %66 : vector<1x256xf32> to vector<4x256xf32>
    %69 = arith.mulf %67, %68 : vector<4x256xf32>
    %70 = arith.addf %64, %69 : vector<4x256xf32>
    %71 = vector.extract_strided_slice %0 {offsets = [0, 12], sizes = [4, 1], strides = [1, 1]} : vector<4x13xf32> to vector<4x1xf32>
    %72 = vector.extract_strided_slice %1 {offsets = [11, 0], sizes = [1, 256], strides = [1, 1]} : vector<12x256xf32> to vector<1x256xf32>
    %73 = vector.broadcast %71 : vector<4x1xf32> to vector<4x256xf32>
    %74 = vector.broadcast %72 : vector<1x256xf32> to vector<4x256xf32>
    %75 = arith.mulf %73, %74 : vector<4x256xf32>
    %76 = arith.addf %70, %75 : vector<4x256xf32>
    %c0_3 = arith.constant 0 : index
    %c0_4 = arith.constant 0 : index
    %77 = vector.load %arg2[%c0_3, %c0_4] : memref<4x256xf32, #tpu.memory_space<vmem>>, vector<4x256xf32>
    tpu.vector_store %arg2[%c0_3, %c0_4], %76 {strides = array<i32>} : memref<4x256xf32, #tpu.memory_space<vmem>>, vector<4x256xf32>,
    return
  }
}

</mosaic_0001>

<llo_original>
// kernel: tpu_custom_call.1
$region0: #{tpu_custom_call.1}
  #allocation0 [shape = 'u32[]', space=smem, size = 0x4, offset = 0x4, fixed_abs, tag = 'smem constant byte address 0x4 - core index']
  #allocation1 [shape = 'u32[72,128]{1,0:T(1,128)}', space=vmem, size = 0x9000, scoped, tag = 'internal scratch']
  %s0 = inlined_call_operand.hbm [shape: f32[4,13], index: 0, kind: input, shape index: {}]
  %s1 = inlined_call_operand.hbm [shape: f32[12,256], index: 1, kind: input, shape index: {}]
  %s2 = inlined_call_operand.hbm [shape: f32[4,256], index: 2, kind: output, shape index: {}]
  %s3 = sld [smem:[#allocation0]]
  $region26: #{tpu_custom_call.1} parent=0
    _
  %s5 = ssub.s32 1, %s3
  %s6 = scalar_select 0, %s5, %s3
  $region1: #{tpu_custom_call.1} parent=0
    #allocation2 [shape = 'u8[2048]{0}', space=vmem, size = 0x800, scoped, tag = 'input window, operand 0, single buffered']
    #allocation3 [shape = 's32[1]{0}', space=sflag, size = 0x4, scoped, tag = 'scoped memory for tpu_custom_call.1']
    #allocation4 [shape = 's32[1]{0}', space=sflag, size = 0x4, scoped, tag = 'scoped memory for tpu_custom_call.1']
    #allocation5 [shape = 'u8[16384]{0}', space=vmem, size = 0x4000, scoped, tag = 'input window, operand 1, single buffered']
    #allocation6 [shape = 's32[1]{0}', space=sflag, size = 0x4, scoped, tag = 'scoped memory for tpu_custom_call.1']
    #allocation7 [shape = 'u8[4096]{0}', space=vmem, size = 0x1000, scoped, tag = 'output window, operand 0, single buffered']
    %7 = vsyncpa [#allocation3], 0
    %8 = vsyncpa [#allocation6], 0
    %9 = vsyncpa [#allocation4], 0
    // Predicated region
    $region2: #{tpu_custom_call.1} parent=1 // pred_check
      _
    $region3: #{tpu_custom_call.1} parent=1 // pred_check_branch
      %11 = sbr.rel (0) target = $region5
    $region4: #{tpu_custom_call.1} parent=1 // pred_region
      %13 = vsyncadd [#allocation3], 0
      %s15 = sshll.u32 %s0, 4
      %s16 = int_to_ptr.hbm [resolvable:$true] %s15
      %s17 = sshll.u32 [#allocation2], 4
      %s18 = int_to_ptr.vmem [resolvable:$true] %s17
      %20 = dma.hbm_to_vmem [thread:$0]  %s16, 64, %s18, [#allocation3]
    $region5: #{tpu_custom_call.1} parent=1 // pred_fallthru
      _
    // Predicated region
    $region6: #{tpu_custom_call.1} parent=1 // pred_check
      _
    $region7: #{tpu_custom_call.1} parent=1 // pred_check_branch
      %22 = sbr.rel (0) target = $region9
    $region8: #{tpu_custom_call.1} parent=1 // pred_region
      %24 = vsyncadd [#allocation6], 0
      %s25 = sshll.u32 %s1, 4
      %s26 = int_to_ptr.hbm [resolvable:$true] %s25
      %s27 = sshll.u32 [#allocation5], 4
      %s28 = int_to_ptr.vmem [resolvable:$true] %s27
      %33 = dma.hbm_to_vmem [thread:$0]  %s26, 512, %s28, [#allocation6], 256, 256, 16
    $region9: #{tpu_custom_call.1} parent=1 // pred_fallthru
      _
    // Predicated region
    $region10: #{tpu_custom_call.1} parent=1 // pred_check
      _
    $region11: #{tpu_custom_call.1} parent=1 // pred_check_branch
      %35 = sbr.rel (0) target = $region13
    $region12: #{tpu_custom_call.1} parent=1 // pred_region
      %37 = dma.done [#allocation3], 64
    $region13: #{tpu_custom_call.1} parent=1 // pred_fallthru
      _
    // Predicated region
    $region14: #{tpu_custom_call.1} parent=1 // pred_check
      _
    $region15: #{tpu_custom_call.1} parent=1 // pred_check_branch
      %39 = sbr.rel (0) target = $region17
    $region16: #{tpu_custom_call.1} parent=1 // pred_region
      %41 = dma.done [#allocation6], 512
    $region17: #{tpu_custom_call.1} parent=1 // pred_fallthru
      _
    %v42 = vld [vmem:[#allocation2] sm:$0xf]
    %v43 = vld [vmem:[#allocation5] sm:$0xff]
    %v44 = vld [vmem:[#allocation5 + $0x8] sm:$0xff]
    %v45 = vld [vmem:[#allocation5 + $0x10] sm:$0xf]
    %v46 = vld [vmem:[#allocation5 + $0x18] sm:$0xf]
    %48 = vset.pattern.permute.xlu0 0
    %49 = vperm.xlu0 %48, %v42
    %v50 = vpop.permute.xlu0 %49
    %52 = vset.pattern.permute.xlu0 1
    %53 = vperm.xlu0 %52, %v42
    %v54 = vpop.permute.xlu0 %53
    %v56 = vperm.slane %v43, 0
    %v57 = vperm.slane %v44, 0
    %v58 = vmul.f32 %v54, %v56
    %v59 = vmul.f32 %v54, %v57
    %v60 = vadd.f32 %v50, %v58
    %v61 = vadd.f32 %v50, %v59
    %62 = vset.pattern.permute.xlu0 2
    %63 = vperm.xlu0 %62, %v42
    %v64 = vpop.permute.xlu0 %63
    %v66 = vperm.slane %v43, 1
    %v67 = vperm.slane %v44, 1
    %v68 = vmul.f32 %v64, %v66
    %v69 = vmul.f32 %v64, %v67
    %v70 = vadd.f32 %v60, %v68
    %v71 = vadd.f32 %v61, %v69
    %72 = vset.pattern.permute.xlu0 3
    %73 = vperm.xlu0 %72, %v42
    %v74 = vpop.permute.xlu0 %73
    %v76 = vperm.slane %v43, 2
    %v77 = vperm.slane %v44, 2
    %v78 = vmul.f32 %v74, %v76
    %v79 = vmul.f32 %v74, %v77
    %v80 = vadd.f32 %v70, %v78
    %v81 = vadd.f32 %v71, %v79
    %82 = vset.pattern.permute.xlu0 4
    %83 = vperm.xlu0 %82, %v42
    %v84 = vpop.permute.xlu0 %83
    %v86 = vperm.slane %v43, 3
    %v87 = vperm.slane %v44, 3
    %v88 = vmul.f32 %v84, %v86
    %v89 = vmul.f32 %v84, %v87
    %v90 = vadd.f32 %v80, %v88
    %v91 = vadd.f32 %v81, %v89
    %92 = vset.pattern.permute.xlu0 5
    %93 = vperm.xlu0 %92, %v42
    %v94 = vpop.permute.xlu0 %93
    %v96 = vperm.slane %v43, 4
    %v97 = vperm.slane %v44, 4
    %v98 = vmul.f32 %v94, %v96
    %v99 = vmul.f32 %v94, %v97
    %v100 = vadd.f32 %v90, %v98
    %v101 = vadd.f32 %v91, %v99
    %102 = vset.pattern.permute.xlu0 6
    %103 = vperm.xlu0 %102, %v42
    %v104 = vpop.permute.xlu0 %103
    %v106 = vperm.slane %v43, 5
    %v107 = vperm.slane %v44, 5
    %v108 = vmul.f32 %v104, %v106
    %v109 = vmul.f32 %v104, %v107
    %v110 = vadd.f32 %v100, %v108
    %v111 = vadd.f32 %v101, %v109
    %112 = vset.pattern.permute.xlu0 7
    %113 = vperm.xlu0 %112, %v42
    %v114 = vpop.permute.xlu0 %113
    %v116 = vperm.slane %v43, 6
    %v117 = vperm.slane %v44, 6
    %v118 = vmul.f32 %v114, %v116
    %v119 = vmul.f32 %v114, %v117
    %v120 = vadd.f32 %v110, %v118
    %v121 = vadd.f32 %v111, %v119
    %122 = vset.pattern.permute.xlu0 8
    %123 = vperm.xlu0 %122, %v42
    %v124 = vpop.permute.xlu0 %123
    %v126 = vperm.slane %v43, 7
    %v127 = vperm.slane %v44, 7
    %v128 = vmul.f32 %v124, %v126
    %v129 = vmul.f32 %v124, %v127
    %v130 = vadd.f32 %v120, %v128
    %v131 = vadd.f32 %v121, %v129
    %132 = vset.pattern.permute.xlu0 9
    %133 = vperm.xlu0 %132, %v42
    %v134 = vpop.permute.xlu0 %133
    %v136 = vperm.slane %v45, 0
    %v137 = vperm.slane %v46, 0
    %v138 = vmul.f32 %v134, %v136
    %v139 = vmul.f32 %v134, %v137
    %v140 = vadd.f32 %v130, %v138
    %v141 = vadd.f32 %v131, %v139
    %142 = vset.pattern.permute.xlu0 10
    %143 = vperm.xlu0 %142, %v42
    %v144 = vpop.permute.xlu0 %143
    %v146 = vperm.slane %v45, 1
    %v147 = vperm.slane %v46, 1
    %v148 = vmul.f32 %v144, %v146
    %v149 = vmul.f32 %v144, %v147
    %v150 = vadd.f32 %v140, %v148
    %v151 = vadd.f32 %v141, %v149
    %152 = vset.pattern.permute.xlu0 11
    %153 = vperm.xlu0 %152, %v42
    %v154 = vpop.permute.xlu0 %153
    %v156 = vperm.slane %v45, 2
    %v157 = vperm.slane %v46, 2
    %v158 = vmul.f32 %v154, %v156
    %v159 = vmul.f32 %v154, %v157
    %v160 = vadd.f32 %v150, %v158
    %v161 = vadd.f32 %v151, %v159
    %162 = vset.pattern.permute.xlu0 12
    %163 = vperm.xlu0 %162, %v42
    %v164 = vpop.permute.xlu0 %163
    %v166 = vperm.slane %v45, 3
    %v167 = vperm.slane %v46, 3
    %v168 = vmul.f32 %v164, %v166
    %v169 = vmul.f32 %v164, %v167
    %v170 = vadd.f32 %v160, %v168
    %v171 = vadd.f32 %v161, %v169
    %v174 = vrot.slane %v171, 4
    %vm175 = vcmask 1043456
    %v176 = vsel %vm175, %v170, %v174
    %178 = vst [vmem:[#allocation7] sm:$0xff] %v176
    // Predicated region
    $region18: #{tpu_custom_call.1} parent=1 // pred_check
      _
    $region19: #{tpu_custom_call.1} parent=1 // pred_check_branch
      %180 = sbr.rel (0) target = $region21
    $region20: #{tpu_custom_call.1} parent=1 // pred_region
      %182 = vsyncadd [#allocation4], 0
      %s184 = sshll.u32 [#allocation7], 4
      %s185 = int_to_ptr.vmem [resolvable:$true] %s184
      %s186 = sshll.u32 %s2, 4
      %s187 = int_to_ptr.hbm [resolvable:$true] %s186
      %189 = dma.vmem_to_hbm [thread:$0]  %s185, 128, %s187, [#allocation4]
    $region21: #{tpu_custom_call.1} parent=1 // pred_fallthru
      _
    // Predicated region
    $region22: #{tpu_custom_call.1} parent=1 // pred_check
      _
    $region23: #{tpu_custom_call.1} parent=1 // pred_check_branch
      %191 = sbr.rel (0) target = $region25
    $region24: #{tpu_custom_call.1} parent=1 // pred_region
      %193 = dma.done [#allocation4], 128
    $region25: #{tpu_custom_call.1} parent=1 // pred_fallthru
      _
    %194 = vsyncpa [#allocation3], 1
    %195 = vsyncpa [#allocation6], 1
    %196 = vsyncpa [#allocation4], 1

</llo_original>
